<compile_context>
chip_gen: v7x
topology: tpu7x:2x2x1
jax: 0.10.0
libtpu: 0.0.40
codegen_flags: <defaults>
</compile_context>

<pallas_src>
import functools

import jax
import jax.numpy as jnp
from jax.experimental import pallas as pl
from jax.experimental.pallas import tpu as pltpu


def _round_up(a: int, m: int) -> int:
    return ((a + m - 1) // m) * m


def gcn_kernel(x_ref, batch_ref, w_ref, b_ref, invc_ref, out_ref, acc_ref):
    """One (h_block, n_block) grid step.

    x_ref:     [TILE_N, 1]   f32  node scalar features
    batch_ref: [1, TILE_N]   i32  graph id per node (-1 for padding)
    w_ref:     [1, TILE_H]   f32  Linear(1, H) weight slice
    b_ref:     [1, TILE_H]   f32  Linear(1, H) bias slice
    invc_ref:  [Gp, 1]       f32  1/count per graph (0 for padded graphs)
    out_ref:   [Gp, TILE_H]  f32  pooled output slice
    acc_ref:   [Gp, TILE_H]  f32  VMEM accumulator (persists across n blocks)
    """
    k = pl.program_id(1)

    @pl.when(k == 0)
    def _():
        acc_ref[...] = jnp.zeros_like(acc_ref)

    # Linear(1, H) + ReLU on the VPU; contracting dim is 1, so the matmul is an
    # exact broadcasted multiply.  (Broadcast happens once per tile.)
    h = jnp.maximum(x_ref[...] * w_ref[...] + b_ref[...], 0.0)        # [TILE_N, TILE_H]

    # Build the segment one-hot in-kernel from batch ids (no [G, N] matrix in HBM).
    gp = acc_ref.shape[0]
    tn = x_ref.shape[0]
    gid = jax.lax.broadcasted_iota(jnp.int32, (gp, tn), 0)            # row = graph id
    onehot = (batch_ref[...] == gid).astype(h.dtype)                  # [Gp, TILE_N]
    # NOTE: on v6e/v7x, `onehot`/`h` could be fed to the MXU in bf16 with f32
    # accumulation; kept f32 here for exact parity with the f32 reference.

    # Segment-sum as an aligned MXU matmul, accumulated in f32.
    acc_ref[...] += jnp.dot(onehot, h, preferred_element_type=jnp.float32)

    # Finalize: scale by 1/count (mean pooling) and store lane-dense.
    @pl.when(k == pl.num_programs(1) - 1)
    def _():
        out_ref[...] = (acc_ref[...] * invc_ref[...]).astype(out_ref.dtype)


@functools.partial(jax.jit, static_argnames=("num_graphs", "tile_n", "tile_h"))
def gcn_forward(x, batch, w, b, *, num_graphs, tile_n=512, tile_h=128):
    """x: [N,1] f32, batch: [N] int32 graph ids, w: [1,H], b: [1,H] -> [G,H]."""
    N = x.shape[0]
    H = w.shape[1]
    G = num_graphs

    # Tile sizes: lane-aligned H tiles, node tiles sized to keep the VMEM live
    # set small (double-buffered inputs + [Gp, TILE_H] accumulator) so the same
    # tiling fits v7x's 64 MiB VMEM as well as v5e/v6e's 128 MiB.
    tn = min(tile_n, _round_up(N, 128))
    th = tile_h

    n_pad = _round_up(N, tn)
    h_pad = _round_up(H, th)
    g_pad = _round_up(max(G, 1), 8)

    # Pad inputs (glue, plain JAX).  Padded nodes get batch id -1 so they match
    # no graph row and contribute exactly zero to the pooled sums.
    x_p = jnp.zeros((n_pad, 1), jnp.float32).at[:N, :].set(x.astype(jnp.float32))
    batch_p = jnp.full((1, n_pad), -1, jnp.int32).at[0, :N].set(batch.astype(jnp.int32))
    w_p = jnp.zeros((1, h_pad), jnp.float32).at[:, :H].set(w.astype(jnp.float32))
    b_p = jnp.zeros((1, h_pad), jnp.float32).at[:, :H].set(b.astype(jnp.float32))

    # Inverse counts per graph (empty graphs -> 0, i.e. zero output row).
    counts = jnp.bincount(batch.astype(jnp.int32), length=G).astype(jnp.float32)
    inv_counts = jnp.where(counts > 0, 1.0 / jnp.maximum(counts, 1.0), 0.0)
    invc_p = jnp.zeros((g_pad, 1), jnp.float32).at[:G, 0].set(inv_counts)

    grid = (h_pad // th, n_pad // tn)   # (parallel H blocks, reduction N blocks)

    out = pl.pallas_call(
        gcn_kernel,
        out_shape=jax.ShapeDtypeStruct((g_pad, h_pad), jnp.float32),
        grid_spec=pltpu.PrefetchScalarGridSpec(
            num_scalar_prefetch=0,
            grid=grid,
            in_specs=[
                pl.BlockSpec((tn, 1), lambda i, k: (k, 0)),       # x tile
                pl.BlockSpec((1, tn), lambda i, k: (0, k)),       # batch ids tile
                pl.BlockSpec((1, th), lambda i, k: (0, i)),       # weight slice
                pl.BlockSpec((1, th), lambda i, k: (0, i)),       # bias slice
                pl.BlockSpec((g_pad, 1), lambda i, k: (0, 0)),    # 1/count
            ],
            out_specs=pl.BlockSpec((g_pad, th), lambda i, k: (0, i)),
            scratch_shapes=[pltpu.VMEM((g_pad, th), jnp.float32)],
        ),
        compiler_params=pltpu.CompilerParams(
            dimension_semantics=("parallel", "arbitrary"),
            vmem_limit_bytes=32 * 1024 * 1024,
        ),
    )(x_p, batch_p, w_p, b_p, invc_p)

    return out[:G, :H]


if __name__ == "__main__":
    H = 32          # hidden_channels
    N = 16          # number of nodes
    G = 2           # number of graphs in the batch

    key = jax.random.PRNGKey(0)
    kx, kw, kb, ke = jax.random.split(key, 4)

    # Node features: [N, 1]
    x = jax.random.normal(kx, (N, 1), dtype=jnp.float32)

    # edge_index is unused by the forward pass but constructed for shape fidelity.
    edge_index = jax.random.randint(ke, (2, 20), 0, N, dtype=jnp.int32)  # noqa: F841

    # Graph assignment: first 8 nodes -> graph 0, last 8 -> graph 1.
    batch = jnp.concatenate(
        [jnp.zeros((8,), jnp.int32), jnp.ones((8,), jnp.int32)]
    )

    # Deterministic Linear(1, H) parameters, shape [in, out].
    w = jax.random.uniform(kw, (1, H), jnp.float32, -1.0, 1.0)
    b = jax.random.uniform(kb, (1, H), jnp.float32, -1.0, 1.0)

    out = gcn_forward(x, batch, w, b, num_graphs=G)
    out = jax.block_until_ready(out)

    # Reference check in plain JAX.
    h_ref = jnp.maximum(x @ w + b, 0.0)
    ref = jnp.stack(
        [h_ref[batch == g].mean(axis=0) for g in range(G)], axis=0
    )
    assert out.shape == (G, H)
    assert jnp.allclose(out, ref, atol=1e-5, rtol=1e-5)

    # TODO(synk): conv2/conv3 (GCNConv) exist in __init__ but are never used in forward.

    print("KERNEL_OK")
</pallas_src>

<mosaic_0001>
module attributes {stable_mosaic.version = 11 : i64} {
  func.func private @main(%arg0: i32) attributes {dimension_semantics = [#tpu.dimension_semantics<core_parallel>], iteration_bounds = array<i64: 2>, tpu.core_type = #tpu.core_type<sc_scalar_subcore>, window_params = []} {
    return
  }
}

module attributes {stable_mosaic.version = 11 : i64} {
  func.func private @main(%arg0: i32) attributes {dimension_semantics = [#tpu.dimension_semantics<core_parallel>], iteration_bounds = array<i64: 2>, tpu.core_type = #tpu.core_type<sc_scalar_subcore>, window_params = []} {
    return
  }
}

module attributes {stable_mosaic.version = 11 : i64} {
  func.func @gcn_kernel(%arg0: i32, %arg1: i32, %arg2: memref<128x1xf32, #tpu.memory_space<vmem>>, %arg3: memref<1x128xi32, #tpu.memory_space<vmem>>, %arg4: memref<1x128xf32, #tpu.memory_space<vmem>>, %arg5: memref<1x128xf32, #tpu.memory_space<vmem>>, %arg6: memref<8x1xf32, #tpu.memory_space<vmem>>, %arg7: memref<8x128xf32, #tpu.memory_space<vmem>>, %arg8: memref<8x128xf32, #tpu.memory_space<vmem>>) attributes {dimension_semantics = [#tpu.dimension_semantics<parallel>, #tpu.dimension_semantics<arbitrary>], iteration_bounds = array<i64: 1, 1>, scalar_prefetch = 0 : i64, scratch_operands = 1 : i64, tpu.core_type = #tpu.core_type<tc>, window_params = [{transform_indices = @transform_0, window_bounds = array<i64: 128, 1>}, {transform_indices = @transform_1, window_bounds = array<i64: 1, 128>}, {transform_indices = @transform_2, window_bounds = array<i64: 1, 128>}, {transform_indices = @transform_3, window_bounds = array<i64: 1, 128>}, {pipeline_mode = #tpu.pipeline_mode<synchronous>, transform_indices = @transform_4, window_bounds = array<i64: 8, 1>}, {transform_indices = @transform_5, window_bounds = array<i64: 8, 128>}]} {
    %c0_i32 = arith.constant 0 : i32
    %0 = arith.cmpi eq, %arg1, %c0_i32 : i32
    %1 = arith.extui %0 : i1 to i32
    %c0_i32_0 = arith.constant 0 : i32
    %2 = arith.cmpi ne, %1, %c0_i32_0 : i32
    scf.if %2 {
      %cst_15 = arith.constant 0.000000e+00 : f32
      %26 = vector.broadcast %cst_15 : f32 to vector<8x128xf32>
      %c0_16 = arith.constant 0 : index
      %c0_17 = arith.constant 0 : index
      %27 = vector.load %arg8[%c0_16, %c0_17] : memref<8x128xf32, #tpu.memory_space<vmem>>, vector<8x128xf32>
      tpu.vector_store %arg8[%c0_16, %c0_17], %26 {strides = array<i32>} : memref<8x128xf32, #tpu.memory_space<vmem>>, vector<8x128xf32>,
    } else {
    }
    %c0 = arith.constant 0 : index
    %c0_1 = arith.constant 0 : index
    %3 = vector.load %arg2[%c0, %c0_1] : memref<128x1xf32, #tpu.memory_space<vmem>>, vector<128x1xf32>
    %c0_2 = arith.constant 0 : index
    %c0_3 = arith.constant 0 : index
    %4 = vector.load %arg4[%c0_2, %c0_3] : memref<1x128xf32, #tpu.memory_space<vmem>>, vector<1x128xf32>
    %5 = vector.broadcast %3 : vector<128x1xf32> to vector<128x128xf32>
    %6 = vector.broadcast %4 : vector<1x128xf32> to vector<128x128xf32>
    %7 = arith.mulf %5, %6 : vector<128x128xf32>
    %c0_4 = arith.constant 0 : index
    %c0_5 = arith.constant 0 : index
    %8 = vector.load %arg5[%c0_4, %c0_5] : memref<1x128xf32, #tpu.memory_space<vmem>>, vector<1x128xf32>
    %9 = vector.broadcast %8 : vector<1x128xf32> to vector<128x128xf32>
    %10 = arith.addf %7, %9 : vector<128x128xf32>
    %cst = arith.constant 0.000000e+00 : f32
    %11 = vector.broadcast %cst : f32 to vector<128x128xf32>
    %12 = arith.maximumf %10, %11 : vector<128x128xf32>
    %13 = tpu.iota {dimensions = array<i32: 0>} : vector<8x128xi32>
    %c0_6 = arith.constant 0 : index
    %c0_7 = arith.constant 0 : index
    %14 = vector.load %arg3[%c0_6, %c0_7] : memref<1x128xi32, #tpu.memory_space<vmem>>, vector<1x128xi32>
    %15 = vector.broadcast %14 : vector<1x128xi32> to vector<8x128xi32>
    %16 = arith.cmpi eq, %15, %13 : vector<8x128xi32>
    %17 = arith.extui %16 : vector<8x128xi1> to vector<8x128xi32>
    %18 = arith.sitofp %17 : vector<8x128xi32> to vector<8x128xf32>
    %c0_8 = arith.constant 0 : index
    %c0_9 = arith.constant 0 : index
    %19 = vector.load %arg8[%c0_8, %c0_9] : memref<8x128xf32, #tpu.memory_space<vmem>>, vector<8x128xf32>
    %cst_10 = arith.constant dense<0.000000e+00> : vector<8x128xf32>
    %20 = tpu.matmul %18, %12, %cst_10 {dimension_numbers = #tpu.dot_dimension_numbers<[1], [0], [0], [1], [0, 0, 1, 1], [], []>} : vector<8x128xf32>, vector<128x128xf32>, vector<8x128xf32> -> vector<8x128xf32>
    %21 = arith.addf %19, %20 : vector<8x128xf32>
    %c0_11 = arith.constant 0 : index
    %c0_12 = arith.constant 0 : index
    %22 = vector.load %arg8[%c0_11, %c0_12] : memref<8x128xf32, #tpu.memory_space<vmem>>, vector<8x128xf32>
    tpu.vector_store %arg8[%c0_11, %c0_12], %21 {strides = array<i32>} : memref<8x128xf32, #tpu.memory_space<vmem>>, vector<8x128xf32>,
    %c0_i32_13 = arith.constant 0 : i32
    %23 = arith.cmpi eq, %arg1, %c0_i32_13 : i32
    %24 = arith.extui %23 : i1 to i32
    %c0_i32_14 = arith.constant 0 : i32
    %25 = arith.cmpi ne, %24, %c0_i32_14 : i32
    scf.if %25 {
      %c0_15 = arith.constant 0 : index
      %c0_16 = arith.constant 0 : index
      %26 = vector.load %arg8[%c0_15, %c0_16] : memref<8x128xf32, #tpu.memory_space<vmem>>, vector<8x128xf32>
      %c0_17 = arith.constant 0 : index
      %c0_18 = arith.constant 0 : index
      %27 = vector.load %arg6[%c0_17, %c0_18] : memref<8x1xf32, #tpu.memory_space<vmem>>, vector<8x1xf32>
      %28 = vector.broadcast %27 : vector<8x1xf32> to vector<8x128xf32>
      %29 = arith.mulf %26, %28 : vector<8x128xf32>
      %c0_19 = arith.constant 0 : index
      %c0_20 = arith.constant 0 : index
      %30 = vector.load %arg7[%c0_19, %c0_20] : memref<8x128xf32, #tpu.memory_space<vmem>>, vector<8x128xf32>
      tpu.vector_store %arg7[%c0_19, %c0_20], %29 {strides = array<i32>} : memref<8x128xf32, #tpu.memory_space<vmem>>, vector<8x128xf32>,
    } else {
    }
    return
  }
  func.func @transform_0(%arg0: i32, %arg1: i32) -> (i32, i32) {
    %c0_i32 = arith.constant 0 : i32
    %c0_i32_0 = arith.constant 0 : i32
    return %arg1, %c0_i32 : i32, i32
  }
  func.func @transform_1(%arg0: i32, %arg1: i32) -> (i32, i32) {
    %c0_i32 = arith.constant 0 : i32
    %c0_i32_0 = arith.constant 0 : i32
    return %c0_i32, %arg1 : i32, i32
  }
  func.func @transform_2(%arg0: i32, %arg1: i32) -> (i32, i32) {
    %c0_i32 = arith.constant 0 : i32
    %c0_i32_0 = arith.constant 0 : i32
    return %c0_i32, %arg0 : i32, i32
  }
  func.func @transform_3(%arg0: i32, %arg1: i32) -> (i32, i32) {
    %c0_i32 = arith.constant 0 : i32
    %c0_i32_0 = arith.constant 0 : i32
    return %c0_i32, %arg0 : i32, i32
  }
  func.func @transform_4(%arg0: i32, %arg1: i32) -> (i32, i32) {
    %c0_i32 = arith.constant 0 : i32
    %c0_i32_0 = arith.constant 0 : i32
    %c0_i32_1 = arith.constant 0 : i32
    return %c0_i32, %c0_i32_0 : i32, i32
  }
  func.func @transform_5(%arg0: i32, %arg1: i32) -> (i32, i32) {
    %c0_i32 = arith.constant 0 : i32
    %c0_i32_0 = arith.constant 0 : i32
    return %c0_i32, %arg0 : i32, i32
  }
}

</mosaic_0001>

<llo_original>
// kernel: gcn_forward.1
$region0: #{gcn_forward.1}
  #allocation0 [shape = 'u32[]', space=smem, size = 0x4, offset = 0x4, fixed_abs, tag = 'smem constant byte address 0x4 - core index']
  #allocation1 [shape = 'u32[144,128]{1,0:T(1,128)}', space=vmem, size = 0x12000, scoped, tag = 'internal scratch']
  #allocation2 [shape = 'f32[8,128]{1,0:T(8,128)}', space=vmem, size = 0x1000, scoped, tag = 'scratch operand']
  %s0 = inlined_call_operand.vmem [shape: f32[128,1], index: 0, kind: input, shape index: {}]
  %s1 = inlined_call_operand.vmem [shape: s32[1,128], index: 1, kind: input, shape index: {}]
  %s2 = inlined_call_operand.vmem [shape: f32[1,128], index: 2, kind: input, shape index: {}]
  %s3 = inlined_call_operand.vmem [shape: f32[1,128], index: 3, kind: input, shape index: {}]
  %s4 = inlined_call_operand.vmem [shape: f32[8,1], index: 4, kind: input, shape index: {}]
  %s5 = inlined_call_operand.vmem [shape: f32[8,128], index: 5, kind: output, shape index: {}]
  %s6 = sld [smem:[#allocation0]]
  $region38: #{gcn_forward.1} parent=0
    _
  %s8 = ssub.s32 1, %s6
  %s9 = scalar_select 0, %s8, %s6
  // Predicated region
  $region2: #{gcn_forward.1} parent=0 // pred_check
    _
  $region3: #{gcn_forward.1} parent=0 // pred_check_branch
    %11 = sbr.rel (0) target = $region5
  $region4: #{gcn_forward.1} parent=0 // pred_region
    _
  $region5: #{gcn_forward.1} parent=0 // pred_fallthru
    _
  // Predicated region
  $region6: #{gcn_forward.1} parent=0 // pred_check
    _
  $region7: #{gcn_forward.1} parent=0 // pred_check_branch
    %13 = sbr.rel (0) target = $region9
  $region8: #{gcn_forward.1} parent=0 // pred_region
    _
  $region9: #{gcn_forward.1} parent=0 // pred_fallthru
    _
  // Predicated region
  $region10: #{gcn_forward.1} parent=0 // pred_check
    _
  $region11: #{gcn_forward.1} parent=0 // pred_check_branch
    %15 = sbr.rel (0) target = $region13
  $region12: #{gcn_forward.1} parent=0 // pred_region
    _
  $region13: #{gcn_forward.1} parent=0 // pred_fallthru
    _
  // Predicated region
  $region14: #{gcn_forward.1} parent=0 // pred_check
    _
  $region15: #{gcn_forward.1} parent=0 // pred_check_branch
    %17 = sbr.rel (0) target = $region17
  $region16: #{gcn_forward.1} parent=0 // pred_region
    _
  $region17: #{gcn_forward.1} parent=0 // pred_fallthru
    _
  // Predicated region
  $region18: #{gcn_forward.1} parent=0 // pred_check
    _
  $region19: #{gcn_forward.1} parent=0 // pred_check_branch
    %19 = sbr.rel (0) target = $region21
  $region20: #{gcn_forward.1} parent=0 // pred_region
    _
  $region21: #{gcn_forward.1} parent=0 // pred_fallthru
    _
  %p20 = scmp.eq.s32.totalorder 0, 0
  // Predicated region
  $region22: #{gcn_forward.1} parent=0 // pred_check
    %p21 = pneg %p20
  $region23: #{gcn_forward.1} parent=0 // pred_check_branch
    %23 = sbr.rel (%p21) target = $region25
  $region24: #{gcn_forward.1} parent=0 // pred_region
    %24 = vst [vmem:[#allocation2] sm:$0xff] 0.0
  $region25: #{gcn_forward.1} parent=0 // pred_fallthru
    _
  %v25 = vld [vmem:[%s0] sm:$0xff]
  %v26 = vld [vmem:[%s0 + $0x8] sm:$0xff]
  %v27 = vld [vmem:[%s0 + $0x10] sm:$0xff]
  %v28 = vld [vmem:[%s0 + $0x18] sm:$0xff]
  %v29 = vld [vmem:[%s0 + $0x20] sm:$0xff]
  %v30 = vld [vmem:[%s0 + $0x28] sm:$0xff]
  %v31 = vld [vmem:[%s0 + $0x30] sm:$0xff]
  %v32 = vld [vmem:[%s0 + $0x38] sm:$0xff]
  %v33 = vld [vmem:[%s0 + $0x40] sm:$0xff]
  %v34 = vld [vmem:[%s0 + $0x48] sm:$0xff]
  %v35 = vld [vmem:[%s0 + $0x50] sm:$0xff]
  %v36 = vld [vmem:[%s0 + $0x58] sm:$0xff]
  %v37 = vld [vmem:[%s0 + $0x60] sm:$0xff]
  %v38 = vld [vmem:[%s0 + $0x68] sm:$0xff]
  %v39 = vld [vmem:[%s0 + $0x70] sm:$0xff]
  %v40 = vld [vmem:[%s0 + $0x78] sm:$0xff]
  %v41 = vld [vmem:[%s2] sm:$0x1]
  %43 = vset.pattern.permute.xlu0 0
  %44 = vperm.xlu0 %43, %v25
  %v45 = vpop.permute.xlu0 %44
  %48 = vset.pattern.permute.xlu0 0
  %49 = vperm.xlu0 %48, %v26
  %v50 = vpop.permute.xlu0 %49
  %53 = vset.pattern.permute.xlu0 0
  %54 = vperm.xlu0 %53, %v27
  %v55 = vpop.permute.xlu0 %54
  %58 = vset.pattern.permute.xlu0 0
  %59 = vperm.xlu0 %58, %v28
  %v60 = vpop.permute.xlu0 %59
  %63 = vset.pattern.permute.xlu0 0
  %64 = vperm.xlu0 %63, %v29
  %v65 = vpop.permute.xlu0 %64
  %68 = vset.pattern.permute.xlu0 0
  %69 = vperm.xlu0 %68, %v30
  %v70 = vpop.permute.xlu0 %69
  %73 = vset.pattern.permute.xlu0 0
  %74 = vperm.xlu0 %73, %v31
  %v75 = vpop.permute.xlu0 %74
  %78 = vset.pattern.permute.xlu0 0
  %79 = vperm.xlu0 %78, %v32
  %v80 = vpop.permute.xlu0 %79
  %83 = vset.pattern.permute.xlu0 0
  %84 = vperm.xlu0 %83, %v33
  %v85 = vpop.permute.xlu0 %84
  %88 = vset.pattern.permute.xlu0 0
  %89 = vperm.xlu0 %88, %v34
  %v90 = vpop.permute.xlu0 %89
  %93 = vset.pattern.permute.xlu0 0
  %94 = vperm.xlu0 %93, %v35
  %v95 = vpop.permute.xlu0 %94
  %98 = vset.pattern.permute.xlu0 0
  %99 = vperm.xlu0 %98, %v36
  %v100 = vpop.permute.xlu0 %99
  %103 = vset.pattern.permute.xlu0 0
  %104 = vperm.xlu0 %103, %v37
  %v105 = vpop.permute.xlu0 %104
  %108 = vset.pattern.permute.xlu0 0
  %109 = vperm.xlu0 %108, %v38
  %v110 = vpop.permute.xlu0 %109
  %113 = vset.pattern.permute.xlu0 0
  %114 = vperm.xlu0 %113, %v39
  %v115 = vpop.permute.xlu0 %114
  %118 = vset.pattern.permute.xlu0 0
  %119 = vperm.xlu0 %118, %v40
  %v120 = vpop.permute.xlu0 %119
  %v123 = vlaneseq
  %v124 = vshrl.u32 %v123, 7
  %v125 = vsub.s32 0, %v124
  %v126 = vrot.slane %v41, %v125
  %v128 = vmul.f32 %v45, %v126
  %v129 = vmul.f32 %v50, %v126
  %v130 = vmul.f32 %v55, %v126
  %v131 = vmul.f32 %v60, %v126
  %v132 = vmul.f32 %v65, %v126
  %v133 = vmul.f32 %v70, %v126
  %v134 = vmul.f32 %v75, %v126
  %v135 = vmul.f32 %v80, %v126
  %v136 = vmul.f32 %v85, %v126
  %v137 = vmul.f32 %v90, %v126
  %v138 = vmul.f32 %v95, %v126
  %v139 = vmul.f32 %v100, %v126
  %v140 = vmul.f32 %v105, %v126
  %v141 = vmul.f32 %v110, %v126
  %v142 = vmul.f32 %v115, %v126
  %v143 = vmul.f32 %v120, %v126
  %v144 = vld [vmem:[%s3] sm:$0x1]
  %v146 = vlaneseq
  %v147 = vshrl.u32 %v146, 7
  %v148 = vsub.s32 0, %v147
  %v149 = vrot.slane %v144, %v148
  %v151 = vadd.f32 %v128, %v149
  %v152 = vadd.f32 %v129, %v149
  %v153 = vadd.f32 %v130, %v149
  %v154 = vadd.f32 %v131, %v149
  %v155 = vadd.f32 %v132, %v149
  %v156 = vadd.f32 %v133, %v149
  %v157 = vadd.f32 %v134, %v149
  %v158 = vadd.f32 %v135, %v149
  %v159 = vadd.f32 %v136, %v149
  %v160 = vadd.f32 %v137, %v149
  %v161 = vadd.f32 %v138, %v149
  %v162 = vadd.f32 %v139, %v149
  %v163 = vadd.f32 %v140, %v149
  %v164 = vadd.f32 %v141, %v149
  %v165 = vadd.f32 %v142, %v149
  %v166 = vadd.f32 %v143, %v149
  %v167 = vmax.f32 %v151, 0.0
  %v168 = vmax.f32 %v152, 0.0
  %v169 = vmax.f32 %v153, 0.0
  %v170 = vmax.f32 %v154, 0.0
  %v171 = vmax.f32 %v155, 0.0
  %v172 = vmax.f32 %v156, 0.0
  %v173 = vmax.f32 %v157, 0.0
  %v174 = vmax.f32 %v158, 0.0
  %v175 = vmax.f32 %v159, 0.0
  %v176 = vmax.f32 %v160, 0.0
  %v177 = vmax.f32 %v161, 0.0
  %v178 = vmax.f32 %v162, 0.0
  %v179 = vmax.f32 %v163, 0.0
  %v180 = vmax.f32 %v164, 0.0
  %v181 = vmax.f32 %v165, 0.0
  %v182 = vmax.f32 %v166, 0.0
  %v183 = vlaneseq
  %v184 = vshrl.u32 %v183, 7
  %v185 = vld [vmem:[%s1] sm:$0x1]
  %v186 = vlaneseq
  %v187 = vshrl.u32 %v186, 7
  %v188 = vsub.s32 0, %v187
  %v189 = vrot.slane %v185, %v188
  %vm190 = vcmp.eq.s32.totalorder %v189, %v184
  %v191 = vsel %vm190, 1, 0
  %v192 = vcvt.s32.f32 %v191
  %v193 = vld [vmem:[#allocation2] sm:$0xff]
  %194 = vmatprep.subr.mxu0 0.0
  %195 = vmatpush1.msra.mxu0 %v167
  %196 = vmatprep.subr.mxu0 0.0
  %197 = vmatpush1.msra.mxu0 %v168
  %198 = vmatprep.subr.mxu0 0.0
  %199 = vmatpush1.msra.mxu0 %v169
  %200 = vmatprep.subr.mxu0 0.0
  %201 = vmatpush1.msra.mxu0 %v170
  %202 = vmatprep.subr.mxu0 0.0
  %203 = vmatpush1.msra.mxu0 %v171
  %204 = vmatprep.subr.mxu0 0.0
  %205 = vmatpush1.msra.mxu0 %v172
  %206 = vmatprep.subr.mxu0 0.0
  %207 = vmatpush1.msra.mxu0 %v173
  %208 = vmatprep.subr.mxu0 0.0
  %209 = vmatpush1.msra.mxu0 %v174
  %210 = vmatprep.subr.mxu0 0.0
  %211 = vmatpush1.msra.mxu0 %v175
  %212 = vmatprep.subr.mxu0 0.0
  %213 = vmatpush1.msra.mxu0 %v176
  %214 = vmatprep.subr.mxu0 0.0
  %215 = vmatpush1.msra.mxu0 %v177
  %216 = vmatprep.subr.mxu0 0.0
  %217 = vmatpush1.msra.mxu0 %v178
  %218 = vmatprep.subr.mxu0 0.0
  %219 = vmatpush1.msra.mxu0 %v179
  %220 = vmatprep.subr.mxu0 0.0
  %221 = vmatpush1.msra.mxu0 %v180
  %222 = vmatprep.subr.mxu0 0.0
  %223 = vmatpush1.msra.mxu0 %v181
  %224 = vmatprep.subr.mxu0 0.0
  %225 = vmatpush1.msra.mxu0 %v182
  %226 = vmatprep.subr.mxu0 0.0
  %227 = vmatpush1.msra.mxu0 0.0
  %228 = vmatprep.subr.mxu0 0.0
  %229 = vmatpush1.msra.mxu0 0.0
  %230 = vmatprep.subr.mxu0 0.0
  %231 = vmatpush1.msra.mxu0 0.0
  %232 = vmatprep.subr.mxu0 0.0
  %233 = vmatpush1.msra.mxu0 0.0
  %234 = vmatprep.subr.mxu0 0.0
  %235 = vmatpush1.msra.mxu0 0.0
  %236 = vmatprep.subr.mxu0 0.0
  %237 = vmatpush1.msra.mxu0 0.0
  %238 = vmatprep.subr.mxu0 0.0
  %239 = vmatpush1.msra.mxu0 0.0
  %240 = vmatprep.subr.mxu0 0.0
  %241 = vmatpush1.msra.mxu0 0.0
  %242 = vmatprep.subr.mxu0 0.0
  %243 = vmatpush1.msra.mxu0 0.0
  %244 = vmatprep.subr.mxu0 0.0
  %245 = vmatpush1.msra.mxu0 0.0
  %246 = vmatprep.subr.mxu0 0.0
  %247 = vmatpush1.msra.mxu0 0.0
  %248 = vmatprep.subr.mxu0 0.0
  %249 = vmatpush1.msra.mxu0 0.0
  %250 = vmatprep.subr.mxu0 0.0
  %251 = vmatpush1.msra.mxu0 0.0
  %252 = vmatprep.subr.mxu0 0.0
  %253 = vmatpush1.msra.mxu0 0.0
  %254 = vmatprep.subr.mxu0 0.0
  %255 = vmatpush1.msra.mxu0 0.0
  %256 = vmatprep.subr.mxu0 0.0
  %257 = vmatpush1.msra.mxu0 0.0
  %258 = vmatprep.mubr.f32.mxu0 0.0
  %259 = vmatmul.mubr.f32.gmra.mrb[0].mxu0 %v192
  %v260 = vpop.f32.mrb[0].mxu0
  %v261 = vadd.f32 0.0, %v260
  %v262 = vpop.f32.mrb[0].mxu0
  %263 = vdwg.mxu0
  %v264 = vadd.f32 %v193, %v261
  %265 = vst [vmem:[#allocation2] sm:$0xff] %v264
  // Predicated region
  $region26: #{gcn_forward.1} parent=0 // pred_check
    %p266 = pneg %p20
  $region27: #{gcn_forward.1} parent=0 // pred_check_branch
    %268 = sbr.rel (%p266) target = $region29
  $region28: #{gcn_forward.1} parent=0 // pred_region
    %v269 = vld [vmem:[#allocation2] sm:$0xff]
    %v270 = vld [vmem:[%s4] sm:$0xff]
    %272 = vset.pattern.permute.xlu0 0
    %273 = vperm.xlu0 %272, %v270
    %v274 = vpop.permute.xlu0 %273
    %v276 = vmul.f32 %v269, %v274
    %277 = vst [vmem:[%s5] sm:$0xff] %v276
  $region29: #{gcn_forward.1} parent=0 // pred_fallthru
    _
  // Predicated region
  $region30: #{gcn_forward.1} parent=0 // pred_check
    _
  $region31: #{gcn_forward.1} parent=0 // pred_check_branch
    %279 = sbr.rel (0) target = $region33
  $region32: #{gcn_forward.1} parent=0 // pred_region
    _
  $region33: #{gcn_forward.1} parent=0 // pred_fallthru
    _
  // Predicated region
  $region34: #{gcn_forward.1} parent=0 // pred_check
    _
  $region35: #{gcn_forward.1} parent=0 // pred_check_branch
    %281 = sbr.rel (0) target = $region37
  $region36: #{gcn_forward.1} parent=0 // pred_region
    _
  $region37: #{gcn_forward.1} parent=0 // pred_fallthru
    _

</llo_original>
